<compile_context>
chip_gen: v7x
topology: tpu7x:2x2x1
jax: 0.10.0
libtpu: 0.0.40
codegen_flags: <defaults>
</compile_context>

<pallas_src>
import jax
import jax.numpy as jnp
from jax.experimental import pallas as pl
from jax.experimental.pallas import tpu as pltpu

_LANES = 128
_SUBLANES = 8
_MAX_TILE_ROWS = 2048  # 2048 rows * 128 lanes * 4 B = 1 MiB per f32 buffer


def _make_loss_kernel(tile_r: int, rows: int, needs_mask: bool):
    groups = tile_r // _SUBLANES

    def loss_kernel(pred_ref, target_ref, sq_ref, abs_ref):
        # Widen in-register, then clamp (matches torch.clamp(pred, -10, 20)).
        p = jnp.clip(pred_ref[...].astype(jnp.float32), -10.0, 20.0)
        t = jnp.clip(target_ref[...].astype(jnp.float32), -10.0, 20.0)
        d = p - t

        if needs_mask:
            # Last block is partial: rows beyond `rows` are Pallas padding
            # (garbage), so zero them before they touch either sum.
            base = pl.program_id(0) * tile_r
            row_ids = jax.lax.broadcasted_iota(jnp.int32, (tile_r, _LANES), 0)
            d = jnp.where(base + row_ids < rows, d, 0.0)

        # Fold (tile_r, 128) -> (tile_r//8, 8, 128) and sum the leading axis:
        # vreg-aligned reshape + pure VPU adds (no XLU / scalar work per step).
        d3 = d.reshape(groups, _SUBLANES, _LANES)
        sq_ref[0] = jnp.sum(d3 * d3, axis=0)
        abs_ref[0] = jnp.sum(jnp.abs(d3), axis=0)

    return loss_kernel


def query_cardinality_loss(pred: jax.Array, target: jax.Array,
                           alpha: float = 0.5) -> jax.Array:
    """Pallas equivalent of QueryCardinalityLoss.forward.

    pred, target: [batch_size, 1] (any float dtype); returns an f32 scalar.
    """
    assert pred.shape == target.shape, "pred/target shape mismatch"
    n_elems = int(pred.size)
    assert n_elems > 0, "empty input"

    # ---- lane-dense repack: flatten, pad to a 128 multiple, reshape --------
    pad = (-n_elems) % _LANES                 # 0 for aligned inputs -> pad elided
    rows = (n_elems + pad) // _LANES
    tile_r = min(_MAX_TILE_ROWS, ((rows + _SUBLANES - 1) // _SUBLANES) * _SUBLANES)
    grid = pl.cdiv(rows, tile_r)
    needs_mask = (rows % tile_r) != 0

    p_flat = pred.reshape(-1)
    t_flat = target.reshape(-1)
    if pad:
        p_flat = jnp.pad(p_flat, (0, pad))
        t_flat = jnp.pad(t_flat, (0, pad))
    p2d = p_flat.reshape(rows, _LANES)
    t2d = t_flat.reshape(rows, _LANES)

    kernel = _make_loss_kernel(tile_r, rows, needs_mask)

    sq_parts, abs_parts = pl.pallas_call(
        kernel,
        out_shape=(
            jax.ShapeDtypeStruct((grid, _SUBLANES, _LANES), jnp.float32),
            jax.ShapeDtypeStruct((grid, _SUBLANES, _LANES), jnp.float32),
        ),
        grid=(grid,),
        in_specs=[
            pl.BlockSpec((tile_r, _LANES), lambda i: (i, 0)),
            pl.BlockSpec((tile_r, _LANES), lambda i: (i, 0)),
        ],
        out_specs=(
            pl.BlockSpec((1, _SUBLANES, _LANES), lambda i: (i, 0, 0)),
            pl.BlockSpec((1, _SUBLANES, _LANES), lambda i: (i, 0, 0)),
        ),
        compiler_params=pltpu.CompilerParams(
            dimension_semantics=("parallel",)),
    )(p2d, t2d)

    # Tiny epilogue: final cross-lane/sublane reduction, mean, and alpha blend.
    inv_n = jnp.float32(1.0 / n_elems)
    mse = jnp.sum(sq_parts) * inv_n
    mae = jnp.sum(abs_parts) * inv_n
    return jnp.float32(alpha) * mse + jnp.float32(1.0 - alpha) * mae


def _ref_loss(pred, target, alpha=0.5):
    p = jnp.clip(pred.astype(jnp.float32), -10.0, 20.0)
    t = jnp.clip(target.astype(jnp.float32), -10.0, 20.0)
    return alpha * jnp.mean((p - t) ** 2) + (1.0 - alpha) * jnp.mean(jnp.abs(p - t))


if __name__ == "__main__":
    key = jax.random.PRNGKey(0)
    k_pred, k_tgt = jax.random.split(key)

    # --- small case consistent with the module ([batch, 1]) -----------------
    batch_size = 8
    pred = jax.random.normal(k_pred, (batch_size, 1), dtype=jnp.float32) * 15.0
    target = jax.random.normal(k_tgt, (batch_size, 1), dtype=jnp.float32) * 15.0

    loss = jax.block_until_ready(query_cardinality_loss(pred, target, alpha=0.5))
    ref = _ref_loss(pred, target, 0.5)
    assert jnp.allclose(loss, ref, rtol=1e-5, atol=1e-5), (loss, ref)

    # --- multi-block case (exercises parallel grid + partial-block mask) ----
    big = 300_000  # rows = 2344 -> 2 blocks of 2048, last block partial
    kp, kt = jax.random.split(jax.random.PRNGKey(1))
    pred_b = jax.random.normal(kp, (big, 1), dtype=jnp.float32) * 15.0
    tgt_b = jax.random.normal(kt, (big, 1), dtype=jnp.float32) * 15.0
    loss_b = jax.block_until_ready(query_cardinality_loss(pred_b, tgt_b, 0.5))
    ref_b = _ref_loss(pred_b, tgt_b, 0.5)
    assert jnp.allclose(loss_b, ref_b, rtol=1e-4, atol=1e-4), (loss_b, ref_b)

    # --- bf16 pass-through (kernel widens in-register; halves HBM bytes) ----
    pred_h = pred.astype(jnp.bfloat16)
    tgt_h = target.astype(jnp.bfloat16)
    loss_h = jax.block_until_ready(query_cardinality_loss(pred_h, tgt_h, 0.5))
    ref_h = _ref_loss(pred_h, tgt_h, 0.5)
    assert jnp.allclose(loss_h, ref_h, rtol=2e-2, atol=2e-2), (loss_h, ref_h)

    print("KERNEL_OK")
</pallas_src>

<mosaic_0001>
module attributes {stable_mosaic.version = 11 : i64} {
  func.func @loss_kernel(%arg0: i32, %arg1: memref<8x128xf32, #tpu.memory_space<vmem>>, %arg2: memref<8x128xf32, #tpu.memory_space<vmem>>, %arg3: memref<1x8x128xf32, #tpu.memory_space<vmem>>, %arg4: memref<1x8x128xf32, #tpu.memory_space<vmem>>) attributes {dimension_semantics = [#tpu.dimension_semantics<parallel>], iteration_bounds = array<i64: 1>, scalar_prefetch = 0 : i64, scratch_operands = 0 : i64, tpu.core_type = #tpu.core_type<tc>, window_params = [{transform_indices = @transform_0, window_bounds = array<i64: 8, 128>}, {transform_indices = @transform_1, window_bounds = array<i64: 8, 128>}, {transform_indices = @transform_2, window_bounds = array<i64: 1, 8, 128>}, {transform_indices = @transform_3, window_bounds = array<i64: 1, 8, 128>}]} {
    %c0 = arith.constant 0 : index
    %c0_0 = arith.constant 0 : index
    %0 = vector.load %arg1[%c0, %c0_0] : memref<8x128xf32, #tpu.memory_space<vmem>>, vector<8x128xf32>
    %cst = arith.constant -1.000000e+01 : f32
    %cst_1 = arith.constant 2.000000e+01 : f32
    %1 = vector.broadcast %cst : f32 to vector<8x128xf32>
    %2 = arith.maximumf %1, %0 : vector<8x128xf32>
    %3 = vector.broadcast %cst_1 : f32 to vector<8x128xf32>
    %4 = arith.minimumf %3, %2 : vector<8x128xf32>
    %c0_2 = arith.constant 0 : index
    %c0_3 = arith.constant 0 : index
    %5 = vector.load %arg2[%c0_2, %c0_3] : memref<8x128xf32, #tpu.memory_space<vmem>>, vector<8x128xf32>
    %cst_4 = arith.constant -1.000000e+01 : f32
    %cst_5 = arith.constant 2.000000e+01 : f32
    %6 = vector.broadcast %cst_4 : f32 to vector<8x128xf32>
    %7 = arith.maximumf %6, %5 : vector<8x128xf32>
    %8 = vector.broadcast %cst_5 : f32 to vector<8x128xf32>
    %9 = arith.minimumf %8, %7 : vector<8x128xf32>
    %10 = arith.subf %4, %9 : vector<8x128xf32>
    %c8_i32 = arith.constant 8 : i32
    %11 = arith.muli %arg0, %c8_i32 : i32
    %12 = tpu.iota {dimensions = array<i32: 0>} : vector<8x128xi32>
    %13 = vector.broadcast %11 : i32 to vector<8x128xi32>
    %14 = arith.addi %13, %12 : vector<8x128xi32>
    %c1_i32 = arith.constant 1 : i32
    %15 = vector.broadcast %c1_i32 : i32 to vector<8x128xi32>
    %16 = arith.cmpi slt, %14, %15 : vector<8x128xi32>
    %cst_6 = arith.constant 0.000000e+00 : f32
    %17 = vector.broadcast %cst_6 : f32 to vector<8x128xf32>
    %18 = arith.select %16, %10, %17 : vector<8x128xi1>, vector<8x128xf32>
    %19 = vector.shape_cast %18 : vector<8x128xf32> to vector<1x8x128xf32>
    %20 = arith.mulf %19, %19 : vector<1x8x128xf32>
    %cst_7 = arith.constant dense<0.000000e+00> : vector<8x128xf32>
    %21 = vector.multi_reduction <add>, %20, %cst_7 [0] : vector<1x8x128xf32> to vector<8x128xf32>
    %c0_8 = arith.constant 0 : index
    %c0_9 = arith.constant 0 : index
    %c0_10 = arith.constant 0 : index
    %22 = vector.load %arg3[%c0_8, %c0_9, %c0_10] : memref<1x8x128xf32, #tpu.memory_space<vmem>>, vector<1x8x128xf32>
    %23 = vector.shape_cast %22 : vector<1x8x128xf32> to vector<8x128xf32>
    %24 = vector.shape_cast %21 : vector<8x128xf32> to vector<1x8x128xf32>
    tpu.vector_store %arg3[%c0_8, %c0_9, %c0_10], %24 {strides = array<i32>} : memref<1x8x128xf32, #tpu.memory_space<vmem>>, vector<1x8x128xf32>,
    %25 = math.absf %19 : vector<1x8x128xf32>
    %cst_11 = arith.constant dense<0.000000e+00> : vector<8x128xf32>
    %26 = vector.multi_reduction <add>, %25, %cst_11 [0] : vector<1x8x128xf32> to vector<8x128xf32>
    %c0_12 = arith.constant 0 : index
    %c0_13 = arith.constant 0 : index
    %c0_14 = arith.constant 0 : index
    %27 = vector.load %arg4[%c0_12, %c0_13, %c0_14] : memref<1x8x128xf32, #tpu.memory_space<vmem>>, vector<1x8x128xf32>
    %28 = vector.shape_cast %27 : vector<1x8x128xf32> to vector<8x128xf32>
    %29 = vector.shape_cast %26 : vector<8x128xf32> to vector<1x8x128xf32>
    tpu.vector_store %arg4[%c0_12, %c0_13, %c0_14], %29 {strides = array<i32>} : memref<1x8x128xf32, #tpu.memory_space<vmem>>, vector<1x8x128xf32>,
    return
  }
  func.func @transform_0(%arg0: i32) -> (i32, i32) {
    %c0_i32 = arith.constant 0 : i32
    %c0_i32_0 = arith.constant 0 : i32
    return %arg0, %c0_i32 : i32, i32
  }
  func.func @transform_1(%arg0: i32) -> (i32, i32) {
    %c0_i32 = arith.constant 0 : i32
    %c0_i32_0 = arith.constant 0 : i32
    return %arg0, %c0_i32 : i32, i32
  }
  func.func @transform_2(%arg0: i32) -> (i32, i32, i32) {
    %c0_i32 = arith.constant 0 : i32
    %c0_i32_0 = arith.constant 0 : i32
    %c0_i32_1 = arith.constant 0 : i32
    return %arg0, %c0_i32, %c0_i32_0 : i32, i32, i32
  }
  func.func @transform_3(%arg0: i32) -> (i32, i32, i32) {
    %c0_i32 = arith.constant 0 : i32
    %c0_i32_0 = arith.constant 0 : i32
    %c0_i32_1 = arith.constant 0 : i32
    return %arg0, %c0_i32, %c0_i32_0 : i32, i32, i32
  }
}

</mosaic_0001>

<llo_original>
// kernel: tpu_custom_call.1
$region0: #{tpu_custom_call.1}
  #allocation0 [shape = 'u32[]', space=smem, size = 0x4, offset = 0x4, fixed_abs, tag = 'smem constant byte address 0x4 - core index']
  #allocation1 [shape = 'u32[144,128]{1,0:T(1,128)}', space=vmem, size = 0x12000, scoped, tag = 'internal scratch']
  %s0 = inlined_call_operand.hbm [shape: f32[1,128], index: 0, kind: input, shape index: {}]
  %s1 = inlined_call_operand.vmem [shape: f32[1,128], index: 1, kind: input, shape index: {}]
  %s2 = inlined_call_operand.hbm [shape: f32[1,8,128], index: 2, kind: output, shape index: {0}]
  %s3 = inlined_call_operand.hbm [shape: f32[1,8,128], index: 3, kind: output, shape index: {1}]
  %4 = xla_tuple %s2, %s3
  %s5 = sld [smem:[#allocation0]]
  $region30: #{tpu_custom_call.1} parent=0
    _
  %s7 = ssub.s32 1, %s5
  %s8 = scalar_select 0, %s7, %s5
  $region1: #{tpu_custom_call.1} parent=0
    #allocation2 [shape = 'u8[4096]{0}', space=vmem, size = 0x1000, scoped, tag = 'input window, operand 0, single buffered']
    #allocation3 [shape = 's32[1]{0}', space=sflag, size = 0x4, scoped, tag = 'scoped memory for tpu_custom_call.1']
    #allocation4 [shape = 's32[1]{0}', space=sflag, size = 0x4, scoped, tag = 'scoped memory for tpu_custom_call.1']
    #allocation5 [shape = 'u8[4096]{0}', space=vmem, size = 0x1000, scoped, tag = 'output window, operand 0, single buffered']
    #allocation6 [shape = 'u8[4096]{0}', space=vmem, size = 0x1000, scoped, tag = 'output window, operand 1, single buffered']
    #allocation7 [shape = 's32[1]{0}', space=sflag, size = 0x4, scoped, tag = 'scoped memory for tpu_custom_call.1']
    %9 = vsyncpa [#allocation3], 0
    %10 = vsyncpa [#allocation4], 0
    %11 = vsyncpa [#allocation7], 0
    // Predicated region
    $region2: #{tpu_custom_call.1} parent=1 // pred_check
      _
    $region3: #{tpu_custom_call.1} parent=1 // pred_check_branch
      %13 = sbr.rel (0) target = $region5
    $region4: #{tpu_custom_call.1} parent=1 // pred_region
      %s15 = ssub.s32 128, 16
      %16 = vsyncadd [#allocation3], %s15
      %s17 = sshll.u32 [#allocation2], 4
      %s18 = int_to_ptr.vmem [resolvable:$true] %s17
      %23 = dma.hbm_to_vmem [thread:$0]  %s0, 16, %s18, [#allocation3], 16, 16, 1
    $region5: #{tpu_custom_call.1} parent=1 // pred_fallthru
      _
    // Predicated region
    $region6: #{tpu_custom_call.1} parent=1 // pred_check
      _
    $region7: #{tpu_custom_call.1} parent=1 // pred_check_branch
      %25 = sbr.rel (0) target = $region9
    $region8: #{tpu_custom_call.1} parent=1 // pred_region
      _
    $region9: #{tpu_custom_call.1} parent=1 // pred_fallthru
      _
    // Predicated region
    $region10: #{tpu_custom_call.1} parent=1 // pred_check
      _
    $region11: #{tpu_custom_call.1} parent=1 // pred_check_branch
      %27 = sbr.rel (0) target = $region13
    $region12: #{tpu_custom_call.1} parent=1 // pred_region
      %28 = dma.done [#allocation3], 128
    $region13: #{tpu_custom_call.1} parent=1 // pred_fallthru
      _
    %v29 = vld [vmem:[#allocation2] sm:$0xff]
    %v30 = vmax.f32 %v29, -10.0
    %v31 = vmin.f32 %v30, 20.0
    %v32 = vld [vmem:[%s1] sm:$0xff]
    %v33 = vmax.f32 %v32, -10.0
    %v34 = vmin.f32 %v33, 20.0
    %v35 = vsub.f32 %v31, %v34
    %s36 = smul.u32 0, 8
    %v37 = vlaneseq
    %v38 = vshrl.u32 %v37, 7
    %v39 = vstv %s36
    %v40 = vadd.s32 %v39, %v38
    %vm41 = vcmp.lt.s32.totalorder %v40, 1
    %v42 = vsel %vm41, %v35, 0.0
    %v43 = vmul.f32 %v42, %v42
    %v44 = vadd.f32 %v43, 0.0
    %45 = vst [vmem:[#allocation5] sm:$0xff] %v44
    %v46 = vand.u32 2147483647, %v42
    %v47 = vadd.f32 %v46, 0.0
    %48 = vst [vmem:[#allocation6] sm:$0xff] %v47
    // Predicated region
    $region14: #{tpu_custom_call.1} parent=1 // pred_check
      _
    $region15: #{tpu_custom_call.1} parent=1 // pred_check_branch
      %50 = sbr.rel (0) target = $region17
    $region16: #{tpu_custom_call.1} parent=1 // pred_region
      %s52 = ssub.s32 128, 128
      %53 = vsyncadd [#allocation4], %s52
      %s55 = sshll.u32 [#allocation5], 4
      %s56 = int_to_ptr.vmem [resolvable:$true] %s55
      %58 = dma.vmem_to_hbm [thread:$0]  %s56, 128, %s2, [#allocation4]
    $region17: #{tpu_custom_call.1} parent=1 // pred_fallthru
      _
    // Predicated region
    $region18: #{tpu_custom_call.1} parent=1 // pred_check
      _
    $region19: #{tpu_custom_call.1} parent=1 // pred_check_branch
      %60 = sbr.rel (0) target = $region21
    $region20: #{tpu_custom_call.1} parent=1 // pred_region
      %s62 = ssub.s32 128, 128
      %63 = vsyncadd [#allocation7], %s62
      %s65 = sshll.u32 [#allocation6], 4
      %s66 = int_to_ptr.vmem [resolvable:$true] %s65
      %68 = dma.vmem_to_hbm [thread:$0]  %s66, 128, %s3, [#allocation7]
    $region21: #{tpu_custom_call.1} parent=1 // pred_fallthru
      _
    // Predicated region
    $region22: #{tpu_custom_call.1} parent=1 // pred_check
      _
    $region23: #{tpu_custom_call.1} parent=1 // pred_check_branch
      %70 = sbr.rel (0) target = $region25
    $region24: #{tpu_custom_call.1} parent=1 // pred_region
      %71 = dma.done [#allocation4], 128
    $region25: #{tpu_custom_call.1} parent=1 // pred_fallthru
      _
    // Predicated region
    $region26: #{tpu_custom_call.1} parent=1 // pred_check
      _
    $region27: #{tpu_custom_call.1} parent=1 // pred_check_branch
      %73 = sbr.rel (0) target = $region29
    $region28: #{tpu_custom_call.1} parent=1 // pred_region
      %74 = dma.done [#allocation7], 128
    $region29: #{tpu_custom_call.1} parent=1 // pred_fallthru
      _
    %75 = vsyncpa [#allocation3], 1
    %76 = vsyncpa [#allocation4], 1
    %77 = vsyncpa [#allocation7], 1

</llo_original>
